<compile_context>
chip_gen: v6e
topology: v6e:2x2x1
jax: 0.10.0
libtpu: 0.0.40
codegen_flags: <defaults>
</compile_context>

<pallas_src>
import jax
import jax.numpy as jnp
from jax.experimental import pallas as pl
from jax.experimental.pallas import tpu as pltpu

HIDDEN = 256
LANES = 128


def _round_up(n, m):
    return ((n + m - 1) // m) * m


def _num_tensorcores():
    """Heuristic TC count per chip (v7x has 2); safe fallback to 1."""
    try:
        kind = jax.devices()[0].device_kind.lower()
        if "v7" in kind:
            return 2
    except Exception:
        pass
    return 1


def mlp_kernel(xs_ref, t_ref, w1xs_ref, w1t_ref, b1_ref,
               w2_ref, b2_ref, w3_ref, b3_ref, out_ref):
    cdt = w2_ref.dtype  # bf16 compute dtype for the MXU matmuls

    # ---- Layer 1: concat([x, t_emb, state]) @ W1 + b1 computed as -----------
    #      [x, state] @ W1_xs  +  t_emb (*) W1_t  +  b1        (row-split W1)
    h = jnp.dot(xs_ref[...], w1xs_ref[...], preferred_element_type=jnp.float32)
    t_emb = t_ref[...] / 1000.0                  # (tb, 1) f32
    h = h + t_emb * w1t_ref[...]                 # outer product on the VPU (f32)
    h = jnp.maximum(h + b1_ref[...], 0.0)

    # ---- Layer 2: 256x256 matmul, bf16 operands / f32 accumulate ------------
    h = jnp.dot(h.astype(cdt), w2_ref[...], preferred_element_type=jnp.float32)
    h = jnp.maximum(h + b2_ref[...], 0.0)

    # ---- Layer 3: output lane-padded to 128 -> dense unmasked bf16 stores ---
    o = jnp.dot(h.astype(cdt), w3_ref[...], preferred_element_type=jnp.float32)
    out_ref[...] = (o + b3_ref[...]).astype(out_ref.dtype)


def prepare_params(raw_params, x_features, *, compute_dtype=jnp.bfloat16):
    """One-time parameter prep (hoisted out of the per-call path).

    Splits W1 row-wise into (rows for [x, state]) + (row for t_emb), casts the
    matmul weights to bf16, pads the output axis to 128 lanes.

    raw_params: (w1, b1, w2, b2, w3, b3), weights laid out (in, out).
    """
    w1, b1, w2, b2, w3, b3 = raw_params
    d_in = w1.shape[0]
    s_features = d_in - x_features - 1
    assert s_features > 0, "concat width must be x_features + 1 + state_features"
    a_out = w3.shape[1]
    o_pad = _round_up(a_out, LANES)
    # Reorder W1 rows so that concat([x, state]) @ w1_xs matches the original
    # concat([x, t_emb, state]) @ W1 once the t_emb row is handled separately.
    w1_xs = jnp.concatenate([w1[:x_features], w1[x_features + 1:]], axis=0)
    return {
        "w1xs": w1_xs.astype(compute_dtype),
        "w1t": w1[x_features:x_features + 1].astype(jnp.float32),
        "b1": b1.reshape(1, -1).astype(jnp.float32),
        "w2": w2.astype(compute_dtype),
        "b2": b2.reshape(1, -1).astype(jnp.float32),
        "w3": jnp.pad(w3, ((0, 0), (0, o_pad - a_out))).astype(compute_dtype),
        "b3": jnp.pad(b3.reshape(1, -1),
                      ((0, 0), (0, o_pad - a_out))).astype(jnp.float32),
        "x_features": x_features,
        "s_features": s_features,
        "a_out": a_out,
        "compute_dtype": compute_dtype,
    }


def simple_mlp_forward(x, t, state, kp, *, tb_max=1024, num_cores=None):
    """x: (B, x_feat), t: (B,), state: (B, s_feat). Returns (B, action_dim) f32."""
    B, x_feat = x.shape
    s_feat = state.shape[1]
    assert x_feat == kp["x_features"] and s_feat == kp["s_features"]
    o_pad = kp["w3"].shape[1]
    a_out = kp["a_out"]
    cdt = kp["compute_dtype"]
    d_xs = x_feat + s_feat

    if num_cores is None:
        num_cores = _num_tensorcores()

    # Fused [x, state] input in bf16 (ordering matches the reordered W1 rows);
    # t stays as a tiny f32 column so the /1000 embedding math stays f32.
    xs = jnp.concatenate([x.astype(cdt), state.astype(cdt)], axis=-1)
    t_col = t.reshape(B, 1).astype(jnp.float32)

    # ---- Generation-aware batch tiling --------------------------------------
    # 1 TC (v5e/v6e): one big tile covering the (8-rounded) batch when it fits.
    # 2 TC (v7x): for >=512 rows, split into an even "parallel" grid so both
    # TensorCores get work; tiles rounded to 16 rows (bf16 sublane packing).
    b8 = _round_up(B, 8)
    if num_cores >= 2 and b8 >= 512:
        tb_eff = min(_round_up(pl.cdiv(b8, num_cores), 16), tb_max)
    else:
        tb_eff = min(b8, tb_max)
    grid = pl.cdiv(B, tb_eff)
    bp = grid * tb_eff

    if bp != B:
        # Ragged batch: pad (<= tile-1 rows). Padded rows produce garbage that
        # is sliced off below -- never reuse the padded output directly.
        pad = ((0, bp - B), (0, 0))
        xs = jnp.pad(xs, pad)
        t_col = jnp.pad(t_col, pad)

    out = pl.pallas_call(
        mlp_kernel,
        out_shape=jax.ShapeDtypeStruct((bp, o_pad), cdt),  # bf16 writeback
        grid=(grid,),
        in_specs=[
            pl.BlockSpec((tb_eff, d_xs), lambda i: (i, 0)),   # fused [x, state]
            pl.BlockSpec((tb_eff, 1), lambda i: (i, 0)),      # t column tile
            # Grid-invariant weights / biases (constant index_map -> no re-DMA).
            pl.BlockSpec((d_xs, HIDDEN), lambda i: (0, 0)),   # W1 rows for [x, state]
            pl.BlockSpec((1, HIDDEN), lambda i: (0, 0)),      # W1 row for t_emb
            pl.BlockSpec((1, HIDDEN), lambda i: (0, 0)),      # b1
            pl.BlockSpec((HIDDEN, HIDDEN), lambda i: (0, 0)),  # W2 (bf16)
            pl.BlockSpec((1, HIDDEN), lambda i: (0, 0)),      # b2
            pl.BlockSpec((HIDDEN, o_pad), lambda i: (0, 0)),  # W3 (bf16, lane-padded)
            pl.BlockSpec((1, o_pad), lambda i: (0, 0)),       # b3 (lane-padded)
        ],
        out_specs=pl.BlockSpec((tb_eff, o_pad), lambda i: (i, 0)),
        compiler_params=pltpu.CompilerParams(
            dimension_semantics=("parallel",)),
    )(xs, t_col,
      kp["w1xs"], kp["w1t"], kp["b1"],
      kp["w2"], kp["b2"], kp["w3"], kp["b3"])
    return out[:B, :a_out].astype(jnp.float32)


def init_params(key, state_dim, action_dim):
    """Deterministic init; weights stored as (in_features, out_features)."""
    d_in = state_dim + 1
    dims = [(d_in, HIDDEN), (HIDDEN, HIDDEN), (HIDDEN, action_dim)]
    params = []
    for (fi, fo) in dims:
        key, kw, kb = jax.random.split(key, 3)
        bound = 1.0 / jnp.sqrt(fi)
        w = jax.random.uniform(kw, (fi, fo), jnp.float32, -bound, bound)
        b = jax.random.uniform(kb, (1, fo), jnp.float32, -bound, bound)
        params += [w, b]
    return tuple(params)


def reference_forward(x, t, state, raw_params):
    """Pure-JAX f32 reference matching the PyTorch module."""
    w1, b1, w2, b2, w3, b3 = raw_params
    t_emb = (t.astype(jnp.float32) / 1000.0)[..., None]
    h = jnp.concatenate(
        [x.astype(jnp.float32), t_emb, state.astype(jnp.float32)], -1)
    h = jnp.maximum(h @ w1 + b1, 0.0)
    h = jnp.maximum(h @ w2 + b2, 0.0)
    return h @ w3 + b3


def reference_forward_bf16(x, t, state, raw_params):
    """Pure-JAX model of the kernel arithmetic (bf16 matmul operands, f32
    accumulation / bias / ReLU, bf16 output store) for a tight numeric check."""
    w1, b1, w2, b2, w3, b3 = raw_params
    bf = jnp.bfloat16
    xf = x.shape[-1]
    t_emb = (t.astype(jnp.float32) / 1000.0)[..., None]
    w1_xs = jnp.concatenate([w1[:xf], w1[xf + 1:]], axis=0)
    xs = jnp.concatenate([x, state], axis=-1)
    h = jnp.dot(xs.astype(bf), w1_xs.astype(bf), preferred_element_type=jnp.float32)
    h = h + t_emb * w1[xf:xf + 1]
    h = jnp.maximum(h + b1, 0.0)
    h = jnp.dot(h.astype(bf), w2.astype(bf), preferred_element_type=jnp.float32)
    h = jnp.maximum(h + b2, 0.0)
    o = jnp.dot(h.astype(bf), w3.astype(bf), preferred_element_type=jnp.float32)
    o = o + b3
    return o.astype(bf).astype(jnp.float32)   # model the bf16 writeback


if __name__ == "__main__":
    state_dim = 12     # first Linear expects state_dim + 1 = 13 input features
    action_dim = 4
    batch = 192        # small demo batch; default tiling -> a single grid step

    key = jax.random.PRNGKey(0)
    kx, kt, ks, kp = jax.random.split(key, 4)
    x = jax.random.normal(kx, (batch, action_dim), jnp.float32)
    t = jax.random.randint(kt, (batch,), 0, 1000, jnp.int32)
    # state features sized so concat([x, t_emb, state]) has state_dim + 1 columns
    state = jax.random.normal(ks, (batch, state_dim - action_dim), jnp.float32)

    raw_params = init_params(kp, state_dim, action_dim)
    params = prepare_params(raw_params, x_features=action_dim)  # once, not per call

    ref_bf16 = reference_forward_bf16(x, t, state, raw_params)
    ref_f32 = reference_forward(x, t, state, raw_params)

    # 1) Default, generation-aware tiling (grid=1 here on any chip).
    out = jax.block_until_ready(simple_mlp_forward(x, t, state, params))
    assert out.shape == (batch, action_dim)
    assert jnp.allclose(out, ref_bf16, atol=2e-2, rtol=2e-2), "mismatch vs bf16 reference"
    assert jnp.allclose(out, ref_f32, atol=5e-2, rtol=5e-2), "mismatch vs f32 reference"

    # 2) Force a ragged batch + multi-step "parallel" grid (exercises padding
    #    and the tiled path regardless of which TPU generation runs the test).
    Br = 150
    out2 = jax.block_until_ready(
        simple_mlp_forward(x[:Br], t[:Br], state[:Br], params, tb_max=64, num_cores=2))
    assert out2.shape == (Br, action_dim)
    assert jnp.allclose(out2, ref_bf16[:Br], atol=2e-2, rtol=2e-2), "mismatch (tiled path)"

    print("KERNEL_OK")
</pallas_src>

<mosaic_0001>
module attributes {stable_mosaic.version = 11 : i64} {
  func.func @mlp_kernel(%arg0: i32, %arg1: memref<192x12xbf16, #tpu.memory_space<vmem>>, %arg2: memref<192x1xf32, #tpu.memory_space<vmem>>, %arg3: memref<12x256xbf16, #tpu.memory_space<vmem>>, %arg4: memref<1x256xf32, #tpu.memory_space<vmem>>, %arg5: memref<1x256xf32, #tpu.memory_space<vmem>>, %arg6: memref<256x256xbf16, #tpu.memory_space<vmem>>, %arg7: memref<1x256xf32, #tpu.memory_space<vmem>>, %arg8: memref<256x128xbf16, #tpu.memory_space<vmem>>, %arg9: memref<1x128xf32, #tpu.memory_space<vmem>>, %arg10: memref<192x128xbf16, #tpu.memory_space<vmem>>) attributes {dimension_semantics = [#tpu.dimension_semantics<parallel>], iteration_bounds = array<i64: 1>, scalar_prefetch = 0 : i64, scratch_operands = 0 : i64, tpu.core_type = #tpu.core_type<tc>, window_params = [{transform_indices = @transform_0, window_bounds = array<i64: 192, 12>}, {transform_indices = @transform_1, window_bounds = array<i64: 192, 1>}, {pipeline_mode = #tpu.pipeline_mode<synchronous>, transform_indices = @transform_2, window_bounds = array<i64: 12, 256>}, {pipeline_mode = #tpu.pipeline_mode<synchronous>, transform_indices = @transform_3, window_bounds = array<i64: 1, 256>}, {pipeline_mode = #tpu.pipeline_mode<synchronous>, transform_indices = @transform_4, window_bounds = array<i64: 1, 256>}, {pipeline_mode = #tpu.pipeline_mode<synchronous>, transform_indices = @transform_5, window_bounds = array<i64: 256, 256>}, {pipeline_mode = #tpu.pipeline_mode<synchronous>, transform_indices = @transform_6, window_bounds = array<i64: 1, 256>}, {pipeline_mode = #tpu.pipeline_mode<synchronous>, transform_indices = @transform_7, window_bounds = array<i64: 256, 128>}, {pipeline_mode = #tpu.pipeline_mode<synchronous>, transform_indices = @transform_8, window_bounds = array<i64: 1, 128>}, {transform_indices = @transform_9, window_bounds = array<i64: 192, 128>}]} {
    %c0 = arith.constant 0 : index
    %c0_0 = arith.constant 0 : index
    %0 = vector.load %arg1[%c0, %c0_0] : memref<192x12xbf16, #tpu.memory_space<vmem>>, vector<192x12xbf16>
    %c0_1 = arith.constant 0 : index
    %c0_2 = arith.constant 0 : index
    %1 = vector.load %arg3[%c0_1, %c0_2] : memref<12x256xbf16, #tpu.memory_space<vmem>>, vector<12x256xbf16>
    %cst = arith.constant dense<0.000000e+00> : vector<192x256xf32>
    %2 = tpu.matmul %0, %1, %cst {dimension_numbers = #tpu.dot_dimension_numbers<[1], [0], [0], [1], [0, 0, 1, 1], [], []>} : vector<192x12xbf16>, vector<12x256xbf16>, vector<192x256xf32> -> vector<192x256xf32>
    %c0_3 = arith.constant 0 : index
    %c0_4 = arith.constant 0 : index
    %3 = vector.load %arg2[%c0_3, %c0_4] : memref<192x1xf32, #tpu.memory_space<vmem>>, vector<192x1xf32>
    %cst_5 = arith.constant 1.000000e+03 : f32
    %4 = vector.broadcast %cst_5 : f32 to vector<192x1xf32>
    %5 = arith.divf %3, %4 : vector<192x1xf32>
    %c0_6 = arith.constant 0 : index
    %c0_7 = arith.constant 0 : index
    %6 = vector.load %arg4[%c0_6, %c0_7] : memref<1x256xf32, #tpu.memory_space<vmem>>, vector<1x256xf32>
    %7 = vector.broadcast %5 : vector<192x1xf32> to vector<192x256xf32>
    %8 = vector.broadcast %6 : vector<1x256xf32> to vector<192x256xf32>
    %9 = arith.mulf %7, %8 : vector<192x256xf32>
    %10 = arith.addf %2, %9 : vector<192x256xf32>
    %c0_8 = arith.constant 0 : index
    %c0_9 = arith.constant 0 : index
    %11 = vector.load %arg5[%c0_8, %c0_9] : memref<1x256xf32, #tpu.memory_space<vmem>>, vector<1x256xf32>
    %12 = vector.broadcast %11 : vector<1x256xf32> to vector<192x256xf32>
    %13 = arith.addf %10, %12 : vector<192x256xf32>
    %cst_10 = arith.constant 0.000000e+00 : f32
    %14 = vector.broadcast %cst_10 : f32 to vector<192x256xf32>
    %15 = arith.maximumf %13, %14 : vector<192x256xf32>
    %16 = arith.truncf %15 : vector<192x256xf32> to vector<192x256xbf16>
    %c0_11 = arith.constant 0 : index
    %c0_12 = arith.constant 0 : index
    %17 = vector.load %arg6[%c0_11, %c0_12] : memref<256x256xbf16, #tpu.memory_space<vmem>>, vector<256x256xbf16>
    %cst_13 = arith.constant dense<0.000000e+00> : vector<192x256xf32>
    %18 = tpu.matmul %16, %17, %cst_13 {dimension_numbers = #tpu.dot_dimension_numbers<[1], [0], [0], [1], [0, 0, 1, 1], [], []>} : vector<192x256xbf16>, vector<256x256xbf16>, vector<192x256xf32> -> vector<192x256xf32>
    %c0_14 = arith.constant 0 : index
    %c0_15 = arith.constant 0 : index
    %19 = vector.load %arg7[%c0_14, %c0_15] : memref<1x256xf32, #tpu.memory_space<vmem>>, vector<1x256xf32>
    %20 = vector.broadcast %19 : vector<1x256xf32> to vector<192x256xf32>
    %21 = arith.addf %18, %20 : vector<192x256xf32>
    %cst_16 = arith.constant 0.000000e+00 : f32
    %22 = vector.broadcast %cst_16 : f32 to vector<192x256xf32>
    %23 = arith.maximumf %21, %22 : vector<192x256xf32>
    %24 = arith.truncf %23 : vector<192x256xf32> to vector<192x256xbf16>
    %c0_17 = arith.constant 0 : index
    %c0_18 = arith.constant 0 : index
    %25 = vector.load %arg8[%c0_17, %c0_18] : memref<256x128xbf16, #tpu.memory_space<vmem>>, vector<256x128xbf16>
    %cst_19 = arith.constant dense<0.000000e+00> : vector<192x128xf32>
    %26 = tpu.matmul %24, %25, %cst_19 {dimension_numbers = #tpu.dot_dimension_numbers<[1], [0], [0], [1], [0, 0, 1, 1], [], []>} : vector<192x256xbf16>, vector<256x128xbf16>, vector<192x128xf32> -> vector<192x128xf32>
    %c0_20 = arith.constant 0 : index
    %c0_21 = arith.constant 0 : index
    %27 = vector.load %arg9[%c0_20, %c0_21] : memref<1x128xf32, #tpu.memory_space<vmem>>, vector<1x128xf32>
    %28 = vector.broadcast %27 : vector<1x128xf32> to vector<192x128xf32>
    %29 = arith.addf %26, %28 : vector<192x128xf32>
    %30 = arith.truncf %29 : vector<192x128xf32> to vector<192x128xbf16>
    %c0_22 = arith.constant 0 : index
    %c0_23 = arith.constant 0 : index
    %31 = vector.load %arg10[%c0_22, %c0_23] : memref<192x128xbf16, #tpu.memory_space<vmem>>, vector<192x128xbf16>
    tpu.vector_store %arg10[%c0_22, %c0_23], %30 {strides = array<i32>} : memref<192x128xbf16, #tpu.memory_space<vmem>>, vector<192x128xbf16>,
    return
  }
  func.func @transform_0(%arg0: i32) -> (i32, i32) {
    %c0_i32 = arith.constant 0 : i32
    %c0_i32_0 = arith.constant 0 : i32
    return %arg0, %c0_i32 : i32, i32
  }
  func.func @transform_1(%arg0: i32) -> (i32, i32) {
    %c0_i32 = arith.constant 0 : i32
    %c0_i32_0 = arith.constant 0 : i32
    return %arg0, %c0_i32 : i32, i32
  }
  func.func @transform_2(%arg0: i32) -> (i32, i32) {
    %c0_i32 = arith.constant 0 : i32
    %c0_i32_0 = arith.constant 0 : i32
    %c0_i32_1 = arith.constant 0 : i32
    return %c0_i32, %c0_i32_0 : i32, i32
  }
  func.func @transform_3(%arg0: i32) -> (i32, i32) {
    %c0_i32 = arith.constant 0 : i32
    %c0_i32_0 = arith.constant 0 : i32
    %c0_i32_1 = arith.constant 0 : i32
    return %c0_i32, %c0_i32_0 : i32, i32
  }
  func.func @transform_4(%arg0: i32) -> (i32, i32) {
    %c0_i32 = arith.constant 0 : i32
    %c0_i32_0 = arith.constant 0 : i32
    %c0_i32_1 = arith.constant 0 : i32
    return %c0_i32, %c0_i32_0 : i32, i32
  }
  func.func @transform_5(%arg0: i32) -> (i32, i32) {
    %c0_i32 = arith.constant 0 : i32
    %c0_i32_0 = arith.constant 0 : i32
    %c0_i32_1 = arith.constant 0 : i32
    return %c0_i32, %c0_i32_0 : i32, i32
  }
  func.func @transform_6(%arg0: i32) -> (i32, i32) {
    %c0_i32 = arith.constant 0 : i32
    %c0_i32_0 = arith.constant 0 : i32
    %c0_i32_1 = arith.constant 0 : i32
    return %c0_i32, %c0_i32_0 : i32, i32
  }
  func.func @transform_7(%arg0: i32) -> (i32, i32) {
    %c0_i32 = arith.constant 0 : i32
    %c0_i32_0 = arith.constant 0 : i32
    %c0_i32_1 = arith.constant 0 : i32
    return %c0_i32, %c0_i32_0 : i32, i32
  }
  func.func @transform_8(%arg0: i32) -> (i32, i32) {
    %c0_i32 = arith.constant 0 : i32
    %c0_i32_0 = arith.constant 0 : i32
    %c0_i32_1 = arith.constant 0 : i32
    return %c0_i32, %c0_i32_0 : i32, i32
  }
  func.func @transform_9(%arg0: i32) -> (i32, i32) {
    %c0_i32 = arith.constant 0 : i32
    %c0_i32_0 = arith.constant 0 : i32
    return %arg0, %c0_i32 : i32, i32
  }
}

</mosaic_0001>

<llo_original>
// kernel: tpu_custom_call.1
$region0: #{tpu_custom_call.1}
  #allocation0 [shape = 'u32[]', space=smem, size = 0x4, offset = 0x4, fixed_abs, tag = 'smem constant byte address 0x4 - core index']
  #allocation1 [shape = 'u32[144,128]{1,0:T(1,128)}', space=vmem, size = 0x12000, scoped, tag = 'internal scratch']
  %s0 = inlined_call_operand.vmem [shape: bf16[192,12], index: 0, kind: input, shape index: {}]
  %s1 = inlined_call_operand.vmem [shape: f32[192,1], index: 1, kind: input, shape index: {}]
  %s2 = inlined_call_operand.vmem [shape: bf16[12,256], index: 2, kind: input, shape index: {}]
  %s3 = inlined_call_operand.vmem [shape: f32[1,256], index: 3, kind: input, shape index: {}]
  %s4 = inlined_call_operand.vmem [shape: f32[1,256], index: 4, kind: input, shape index: {}]
  %s5 = inlined_call_operand.vmem [shape: bf16[256,256], index: 5, kind: input, shape index: {}]
  %s6 = inlined_call_operand.vmem [shape: f32[1,256], index: 6, kind: input, shape index: {}]
  %s7 = inlined_call_operand.hbm [shape: bf16[256,128], index: 7, kind: input, shape index: {}]
  %s8 = inlined_call_operand.vmem [shape: f32[1,128], index: 8, kind: input, shape index: {}]
  %s9 = inlined_call_operand.hbm [shape: bf16[192,128], index: 9, kind: output, shape index: {}]
  %s10 = sld [smem:[#allocation0]]
  $region50: #{tpu_custom_call.1} parent=0
    _
  %s12 = ssub.s32 1, %s10
  %s13 = scalar_select 0, %s12, %s10
  $region1: #{tpu_custom_call.1} parent=0
    #allocation2 [shape = 'u8[65536]{0}', space=vmem, size = 0x10000, scoped, tag = 'input window, operand 7, single buffered']
    #allocation3 [shape = 's32[1]{0}', space=sflag, size = 0x4, scoped, tag = 'scoped memory for tpu_custom_call.1']
    #allocation4 [shape = 's32[1]{0}', space=sflag, size = 0x4, scoped, tag = 'scoped memory for tpu_custom_call.1']
    #allocation5 [shape = 'u8[49152]{0}', space=vmem, size = 0xc000, scoped, tag = 'output window, operand 0, single buffered']
    %14 = vsyncpa [#allocation3], 0
    %15 = vsyncpa [#allocation4], 0
    // Predicated region
    $region2: #{tpu_custom_call.1} parent=1 // pred_check
      _
    $region3: #{tpu_custom_call.1} parent=1 // pred_check_branch
      %17 = sbr.rel (0) target = $region5
    $region4: #{tpu_custom_call.1} parent=1 // pred_region
      _
    $region5: #{tpu_custom_call.1} parent=1 // pred_fallthru
      _
    // Predicated region
    $region6: #{tpu_custom_call.1} parent=1 // pred_check
      _
    $region7: #{tpu_custom_call.1} parent=1 // pred_check_branch
      %19 = sbr.rel (0) target = $region9
    $region8: #{tpu_custom_call.1} parent=1 // pred_region
      _
    $region9: #{tpu_custom_call.1} parent=1 // pred_fallthru
      _
    // Predicated region
    $region10: #{tpu_custom_call.1} parent=1 // pred_check
      _
    $region11: #{tpu_custom_call.1} parent=1 // pred_check_branch
      %21 = sbr.rel (0) target = $region13
    $region12: #{tpu_custom_call.1} parent=1 // pred_region
      _
    $region13: #{tpu_custom_call.1} parent=1 // pred_fallthru
      _
    // Predicated region
    $region14: #{tpu_custom_call.1} parent=1 // pred_check
      _
    $region15: #{tpu_custom_call.1} parent=1 // pred_check_branch
      %23 = sbr.rel (0) target = $region17
    $region16: #{tpu_custom_call.1} parent=1 // pred_region
      _
    $region17: #{tpu_custom_call.1} parent=1 // pred_fallthru
      _
    // Predicated region
    $region18: #{tpu_custom_call.1} parent=1 // pred_check
      _
    $region19: #{tpu_custom_call.1} parent=1 // pred_check_branch
      %25 = sbr.rel (0) target = $region21
    $region20: #{tpu_custom_call.1} parent=1 // pred_region
      _
    $region21: #{tpu_custom_call.1} parent=1 // pred_fallthru
      _
    // Predicated region
    $region22: #{tpu_custom_call.1} parent=1 // pred_check
      _
    $region23: #{tpu_custom_call.1} parent=1 // pred_check_branch
      %27 = sbr.rel (0) target = $region25
    $region24: #{tpu_custom_call.1} parent=1 // pred_region
      _
    $region25: #{tpu_custom_call.1} parent=1 // pred_fallthru
      _
    // Predicated region
    $region26: #{tpu_custom_call.1} parent=1 // pred_check
      _
    $region27: #{tpu_custom_call.1} parent=1 // pred_check_branch
      %29 = sbr.rel (0) target = $region29
    $region28: #{tpu_custom_call.1} parent=1 // pred_region
      _
    $region29: #{tpu_custom_call.1} parent=1 // pred_fallthru
      _
    // Predicated region
    $region30: #{tpu_custom_call.1} parent=1 // pred_check
      _
    $region31: #{tpu_custom_call.1} parent=1 // pred_check_branch
      %31 = sbr.rel (0) target = $region33
    $region32: #{tpu_custom_call.1} parent=1 // pred_region
      %s33 = ssub.s32 2048, 2048
      %34 = vsyncadd [#allocation3], %s33
      %s35 = sshll.u32 [#allocation2], 4
      %s36 = int_to_ptr.vmem [resolvable:$true] %s35
      %41 = dma.hbm_to_vmem [thread:$0]  %s7, 2048, %s36, [#allocation3], 64, 64, 4
    $region33: #{tpu_custom_call.1} parent=1 // pred_fallthru
      _
    // Predicated region
    $region34: #{tpu_custom_call.1} parent=1 // pred_check
      _
    $region35: #{tpu_custom_call.1} parent=1 // pred_check_branch
      %43 = sbr.rel (0) target = $region37
    $region36: #{tpu_custom_call.1} parent=1 // pred_region
      _
    $region37: #{tpu_custom_call.1} parent=1 // pred_fallthru
      _
    // Predicated region
    $region38: #{tpu_custom_call.1} parent=1 // pred_check
      _
    $region39: #{tpu_custom_call.1} parent=1 // pred_check_branch
      %45 = sbr.rel (0) target = $region41
    $region40: #{tpu_custom_call.1} parent=1 // pred_region
      %46 = dma.done [#allocation3], 2048
    $region41: #{tpu_custom_call.1} parent=1 // pred_fallthru
      _
    %v48 = vld [vmem:[%s0] sm:$0xf]
    %v49 = vld [vmem:[%s0 + $0x4] sm:$0xf]
    %v50 = vld [vmem:[%s0 + $0x8] sm:$0xf]
    %v51 = vld [vmem:[%s0 + $0xc] sm:$0xf]
    %v52 = vld [vmem:[%s0 + $0x10] sm:$0xf]
    %v53 = vld [vmem:[%s0 + $0x14] sm:$0xf]
    %v54 = vld [vmem:[%s0 + $0x18] sm:$0xf]
    %v55 = vld [vmem:[%s0 + $0x1c] sm:$0xf]
    %v56 = vld [vmem:[%s0 + $0x20] sm:$0xf]
    %v57 = vld [vmem:[%s0 + $0x24] sm:$0xf]
    %v58 = vld [vmem:[%s0 + $0x28] sm:$0xf]
    %v59 = vld [vmem:[%s0 + $0x2c] sm:$0xf]
    %v60 = vld [vmem:[%s0 + $0x30] sm:$0xf]
    %v61 = vld [vmem:[%s0 + $0x34] sm:$0xf]
    %v62 = vld [vmem:[%s0 + $0x38] sm:$0xf]
    %v63 = vld [vmem:[%s0 + $0x3c] sm:$0xf]
    %v64 = vld [vmem:[%s0 + $0x40] sm:$0xf]
    %v65 = vld [vmem:[%s0 + $0x44] sm:$0xf]
    %v66 = vld [vmem:[%s0 + $0x48] sm:$0xf]
    %v67 = vld [vmem:[%s0 + $0x4c] sm:$0xf]
    %v68 = vld [vmem:[%s0 + $0x50] sm:$0xf]
    %v69 = vld [vmem:[%s0 + $0x54] sm:$0xf]
    %v70 = vld [vmem:[%s0 + $0x58] sm:$0xf]
    %v71 = vld [vmem:[%s0 + $0x5c] sm:$0xf]
    %v72 = vld [vmem:[%s2] sm:$0xff]
    %v73 = vld [vmem:[%s2 + $0x8] sm:$0x33]
    %v74 = vld [vmem:[%s1] sm:$0xff]
    %v75 = vld [vmem:[%s1 + $0x8] sm:$0xff]
    %v76 = vld [vmem:[%s1 + $0x10] sm:$0xff]
    %v77 = vld [vmem:[%s1 + $0x18] sm:$0xff]
    %v78 = vld [vmem:[%s1 + $0x20] sm:$0xff]
    %v79 = vld [vmem:[%s1 + $0x28] sm:$0xff]
    %v80 = vld [vmem:[%s1 + $0x30] sm:$0xff]
    %v81 = vld [vmem:[%s1 + $0x38] sm:$0xff]
    %v82 = vld [vmem:[%s1 + $0x40] sm:$0xff]
    %v83 = vld [vmem:[%s1 + $0x48] sm:$0xff]
    %v84 = vld [vmem:[%s1 + $0x50] sm:$0xff]
    %v85 = vld [vmem:[%s1 + $0x58] sm:$0xff]
    %v86 = vld [vmem:[%s1 + $0x60] sm:$0xff]
    %v87 = vld [vmem:[%s1 + $0x68] sm:$0xff]
    %v88 = vld [vmem:[%s1 + $0x70] sm:$0xff]
    %v89 = vld [vmem:[%s1 + $0x78] sm:$0xff]
    %v90 = vld [vmem:[%s1 + $0x80] sm:$0xff]
    %v91 = vld [vmem:[%s1 + $0x88] sm:$0xff]
    %v92 = vld [vmem:[%s1 + $0x90] sm:$0xff]
    %v93 = vld [vmem:[%s1 + $0x98] sm:$0xff]
    %v94 = vld [vmem:[%s1 + $0xa0] sm:$0xff]
    %v95 = vld [vmem:[%s1 + $0xa8] sm:$0xff]
    %v96 = vld [vmem:[%s1 + $0xb0] sm:$0xff]
    %v97 = vld [vmem:[%s1 + $0xb8] sm:$0xff]
    %v98 = vrcp.pop 1000.0
    %v99 = vmul.f32 %v74, %v98
    %v100 = vmul.f32 %v75, %v98
    %v101 = vmul.f32 %v76, %v98
    %v102 = vmul.f32 %v77, %v98
    %v103 = vmul.f32 %v78, %v98
    %v104 = vmul.f32 %v79, %v98
    %v105 = vmul.f32 %v80, %v98
    %v106 = vmul.f32 %v81, %v98
    %v107 = vmul.f32 %v82, %v98
    %v108 = vmul.f32 %v83, %v98
    %v109 = vmul.f32 %v84, %v98
    %v110 = vmul.f32 %v85, %v98
    %v111 = vmul.f32 %v86, %v98
    %v112 = vmul.f32 %v87, %v98
    %v113 = vmul.f32 %v88, %v98
    %v114 = vmul.f32 %v89, %v98
    %v115 = vmul.f32 %v90, %v98
    %v116 = vmul.f32 %v91, %v98
    %v117 = vmul.f32 %v92, %v98
    %v118 = vmul.f32 %v93, %v98
    %v119 = vmul.f32 %v94, %v98
    %v120 = vmul.f32 %v95, %v98
    %v121 = vmul.f32 %v96, %v98
    %v122 = vmul.f32 %v97, %v98
    %v123 = vld [vmem:[%s3] sm:$0x3]
    %125 = vset.pattern.permute.xlu0 0
    %126 = vperm.xlu0 %125, %v99
    %v127 = vpop.permute.xlu0 %126
    %130 = vset.pattern.permute.xlu0 0
    %131 = vperm.xlu0 %130, %v100
    %v132 = vpop.permute.xlu0 %131
    %135 = vset.pattern.permute.xlu0 0
    %136 = vperm.xlu0 %135, %v101
    %v137 = vpop.permute.xlu0 %136
    %140 = vset.pattern.permute.xlu0 0
    %141 = vperm.xlu0 %140, %v102
    %v142 = vpop.permute.xlu0 %141
    %145 = vset.pattern.permute.xlu0 0
    %146 = vperm.xlu0 %145, %v103
    %v147 = vpop.permute.xlu0 %146
    %150 = vset.pattern.permute.xlu0 0
    %151 = vperm.xlu0 %150, %v104
    %v152 = vpop.permute.xlu0 %151
    %155 = vset.pattern.permute.xlu0 0
    %156 = vperm.xlu0 %155, %v105
    %v157 = vpop.permute.xlu0 %156
    %160 = vset.pattern.permute.xlu0 0
    %161 = vperm.xlu0 %160, %v106
    %v162 = vpop.permute.xlu0 %161
    %165 = vset.pattern.permute.xlu0 0
    %166 = vperm.xlu0 %165, %v107
    %v167 = vpop.permute.xlu0 %166
    %170 = vset.pattern.permute.xlu0 0
    %171 = vperm.xlu0 %170, %v108
    %v172 = vpop.permute.xlu0 %171
    %175 = vset.pattern.permute.xlu0 0
    %176 = vperm.xlu0 %175, %v109
    %v177 = vpop.permute.xlu0 %176
    %180 = vset.pattern.permute.xlu0 0
    %181 = vperm.xlu0 %180, %v110
    %v182 = vpop.permute.xlu0 %181
    %185 = vset.pattern.permute.xlu0 0
    %186 = vperm.xlu0 %185, %v111
    %v187 = vpop.permute.xlu0 %186
    %190 = vset.pattern.permute.xlu0 0
    %191 = vperm.xlu0 %190, %v112
    %v192 = vpop.permute.xlu0 %191
    %195 = vset.pattern.permute.xlu0 0
    %196 = vperm.xlu0 %195, %v113
    %v197 = vpop.permute.xlu0 %196
    %200 = vset.pattern.permute.xlu0 0
    %201 = vperm.xlu0 %200, %v114
    %v202 = vpop.permute.xlu0 %201
    %205 = vset.pattern.permute.xlu0 0
    %206 = vperm.xlu0 %205, %v115
    %v207 = vpop.permute.xlu0 %206
    %210 = vset.pattern.permute.xlu0 0
    %211 = vperm.xlu0 %210, %v116
    %v212 = vpop.permute.xlu0 %211
    %215 = vset.pattern.permute.xlu0 0
    %216 = vperm.xlu0 %215, %v117
    %v217 = vpop.permute.xlu0 %216
    %220 = vset.pattern.permute.xlu0 0
    %221 = vperm.xlu0 %220, %v118
    %v222 = vpop.permute.xlu0 %221
    %225 = vset.pattern.permute.xlu0 0
    %226 = vperm.xlu0 %225, %v119
    %v227 = vpop.permute.xlu0 %226
    %230 = vset.pattern.permute.xlu0 0
    %231 = vperm.xlu0 %230, %v120
    %v232 = vpop.permute.xlu0 %231
    %235 = vset.pattern.permute.xlu0 0
    %236 = vperm.xlu0 %235, %v121
    %v237 = vpop.permute.xlu0 %236
    %240 = vset.pattern.permute.xlu0 0
    %241 = vperm.xlu0 %240, %v122
    %v242 = vpop.permute.xlu0 %241
    %v245 = vlaneseq
    %v246 = vshrl.u32 %v245, 7
    %v247 = vsub.s32 0, %v246
    %v248 = vrot.slane %v123, %v247
    %v249 = vlaneseq
    %v250 = vshrl.u32 %v249, 7
    %v251 = vsub.s32 1, %v250
    %v252 = vrot.slane %v123, %v251
    %v255 = vmul.f32 %v127, %v248
    %v256 = vmul.f32 %v127, %v252
    %v257 = vmul.f32 %v132, %v248
    %v258 = vmul.f32 %v132, %v252
    %v259 = vmul.f32 %v137, %v248
    %v260 = vmul.f32 %v137, %v252
    %v261 = vmul.f32 %v142, %v248
    %v262 = vmul.f32 %v142, %v252
    %v263 = vmul.f32 %v147, %v248
    %v264 = vmul.f32 %v147, %v252
    %v265 = vmul.f32 %v152, %v248
    %v266 = vmul.f32 %v152, %v252
    %v267 = vmul.f32 %v157, %v248
    %v268 = vmul.f32 %v157, %v252
    %v269 = vmul.f32 %v162, %v248
    %v270 = vmul.f32 %v162, %v252
    %v271 = vmul.f32 %v167, %v248
    %v272 = vmul.f32 %v167, %v252
    %v273 = vmul.f32 %v172, %v248
    %v274 = vmul.f32 %v172, %v252
    %v275 = vmul.f32 %v177, %v248
    %v276 = vmul.f32 %v177, %v252
    %v277 = vmul.f32 %v182, %v248
    %v278 = vmul.f32 %v182, %v252
    %v279 = vmul.f32 %v187, %v248
    %v280 = vmul.f32 %v187, %v252
    %v281 = vmul.f32 %v192, %v248
    %v282 = vmul.f32 %v192, %v252
    %v283 = vmul.f32 %v197, %v248
    %v284 = vmul.f32 %v197, %v252
    %v285 = vmul.f32 %v202, %v248
    %v286 = vmul.f32 %v202, %v252
    %v287 = vmul.f32 %v207, %v248
    %v288 = vmul.f32 %v207, %v252
    %v289 = vmul.f32 %v212, %v248
    %v290 = vmul.f32 %v212, %v252
    %v291 = vmul.f32 %v217, %v248
    %v292 = vmul.f32 %v217, %v252
    %v293 = vmul.f32 %v222, %v248
    %v294 = vmul.f32 %v222, %v252
    %v295 = vmul.f32 %v227, %v248
    %v296 = vmul.f32 %v227, %v252
    %v297 = vmul.f32 %v232, %v248
    %v298 = vmul.f32 %v232, %v252
    %v299 = vmul.f32 %v237, %v248
    %v300 = vmul.f32 %v237, %v252
    %v301 = vmul.f32 %v242, %v248
    %v302 = vmul.f32 %v242, %v252
    %v327 = vunpack.c.l.b16 %v48
    %v328 = vunpack.c.l.b16 %v49
    %v329 = vunpack.c.l.b16 %v50
    %v330 = vunpack.c.l.b16 %v51
    %v331 = vunpack.c.l.b16 %v52
    %v332 = vunpack.c.l.b16 %v53
    %v333 = vunpack.c.l.b16 %v54
    %v334 = vunpack.c.l.b16 %v55
    %v335 = vunpack.c.l.b16 %v56
    %v336 = vunpack.c.l.b16 %v57
    %v337 = vunpack.c.l.b16 %v58
    %v338 = vunpack.c.l.b16 %v59
    %v339 = vunpack.c.l.b16 %v60
    %v340 = vunpack.c.l.b16 %v61
    %v341 = vunpack.c.l.b16 %v62
    %v342 = vunpack.c.l.b16 %v63
    %v343 = vunpack.c.l.b16 %v64
    %v344 = vunpack.c.l.b16 %v65
    %v345 = vunpack.c.l.b16 %v66
    %v346 = vunpack.c.l.b16 %v67
    %v347 = vunpack.c.l.b16 %v68
    %v348 = vunpack.c.l.b16 %v69
    %v349 = vunpack.c.l.b16 %v70
    %v350 = vunpack.c.l.b16 %v71
    %v351 = vpack.c.b16 %v328, %v327
    %v352 = vpack.c.b16 %v330, %v329
    %v353 = vpack.c.b16 %v332, %v331
    %v354 = vpack.c.b16 %v334, %v333
    %v355 = vpack.c.b16 %v336, %v335
    %v356 = vpack.c.b16 %v338, %v337
    %v357 = vpack.c.b16 %v340, %v339
    %v358 = vpack.c.b16 %v342, %v341
    %v359 = vpack.c.b16 %v344, %v343
    %v360 = vpack.c.b16 %v346, %v345
    %v361 = vpack.c.b16 %v348, %v347
    %v362 = vpack.c.b16 %v350, %v349
    %v365 = vunpack.c.l.b16 %v72
    %v366 = vunpack.c.h.b16 %v72
    %v367 = vunpack.c.l.b16 %v73
    %v368 = vunpack.c.h.b16 %v73
    %v369 = vpack.c.b16 %v367, %v365
    %v370 = vpack.c.b16 %v368, %v366
    %vm371 = vcmask 97280
    %v373 = vsel %vm371, %v351, 0
    %v376 = vsel %vm371, %v352, 0
    %v379 = vsel %vm371, %v353, 0
    %v382 = vsel %vm371, %v354, 0
    %v385 = vsel %vm371, %v355, 0
    %v388 = vsel %vm371, %v356, 0
    %v391 = vsel %vm371, %v357, 0
    %v394 = vsel %vm371, %v358, 0
    %v397 = vsel %vm371, %v359, 0
    %v400 = vsel %vm371, %v360, 0
    %v403 = vsel %vm371, %v361, 0
    %v406 = vsel %vm371, %v362, 0
    %vm408 = vcmask 1045504
    %v410 = vsel %vm408, %v369, 0
    %v413 = vsel %vm408, %v370, 0
    %415 = vmatprep.subr.bf16.mxu0 0
    %416 = vmatpush1.bf16.msra.mxu0 0
    %417 = vmatprep.subr.bf16.mxu0 0
    %418 = vmatpush1.bf16.msra.mxu0 0
    %419 = vmatprep.subr.bf16.mxu0 0
    %420 = vmatpush1.bf16.msra.mxu0 0
    %421 = vmatprep.subr.bf16.mxu0 0
    %422 = vmatpush1.bf16.msra.mxu0 0
    %423 = vmatprep.subr.bf16.mxu0 0
    %424 = vmatpush1.bf16.msra.mxu0 0
    %425 = vmatprep.subr.bf16.mxu0 0
    %426 = vmatpush1.bf16.msra.mxu0 0
    %427 = vmatprep.subr.bf16.mxu0 0
    %428 = vmatpush1.bf16.msra.mxu0 0
    %429 = vmatprep.subr.bf16.mxu0 %v413
    %430 = vmatpush1.bf16.msra.mxu0 %v410
    %431 = vmatprep.subr.bf16.mxu0 0
    %432 = vmatpush2.bf16.msra.mxu0 0
    %433 = vmatprep.subr.bf16.mxu0 0
    %434 = vmatpush2.bf16.msra.mxu0 0
    %435 = vmatprep.subr.bf16.mxu0 0
    %436 = vmatpush2.bf16.msra.mxu0 0
    %437 = vmatprep.subr.bf16.mxu0 0
    %438 = vmatpush2.bf16.msra.mxu0 0
    %439 = vmatprep.subr.bf16.mxu0 0
    %440 = vmatpush2.bf16.msra.mxu0 0
    %441 = vmatprep.subr.bf16.mxu0 0
    %442 = vmatpush2.bf16.msra.mxu0 0
    %443 = vmatprep.subr.bf16.mxu0 0
    %444 = vmatpush2.bf16.msra.mxu0 0
    %445 = vmatprep.subr.bf16.mxu0 0
    %446 = vmatpush2.bf16.msra.mxu0 0
    %447 = vmatprep.mubr.bf16.mxu0 0
    %448 = vmatmul.mubr.bf16.gmra.mxu0 %v373
    %v449 = vpop.f32.mrf.mxu0
    %v450 = vadd.f32 %v255, %v449
    %v451 = vpop.f32.mrf.mxu0
    %v452 = vadd.f32 %v256, %v451
    %v453 = vpop.f32.mrf.mxu0
    %v454 = vadd.f32 %v257, %v453
    %v455 = vpop.f32.mrf.mxu0
    %v456 = vadd.f32 %v258, %v455
    %457 = vmatprep.mubr.bf16.mxu0 0
    %458 = vmatmul.mubr.bf16.gmra.mxu0 %v376
    %v459 = vpop.f32.mrf.mxu0
    %v460 = vadd.f32 %v259, %v459
    %v461 = vpop.f32.mrf.mxu0
    %v462 = vadd.f32 %v260, %v461
    %v463 = vpop.f32.mrf.mxu0
    %v464 = vadd.f32 %v261, %v463
    %v465 = vpop.f32.mrf.mxu0
    %v466 = vadd.f32 %v262, %v465
    %467 = vmatprep.mubr.bf16.mxu0 0
    %468 = vmatmul.mubr.bf16.gmra.mxu0 %v379
    %v469 = vpop.f32.mrf.mxu0
    %v470 = vadd.f32 %v263, %v469
    %v471 = vpop.f32.mrf.mxu0
    %v472 = vadd.f32 %v264, %v471
    %v473 = vpop.f32.mrf.mxu0
    %v474 = vadd.f32 %v265, %v473
    %v475 = vpop.f32.mrf.mxu0
    %v476 = vadd.f32 %v266, %v475
    %477 = vmatprep.mubr.bf16.mxu0 0
    %478 = vmatmul.mubr.bf16.gmra.mxu0 %v382
    %v479 = vpop.f32.mrf.mxu0
    %v480 = vadd.f32 %v267, %v479
    %v481 = vpop.f32.mrf.mxu0
    %v482 = vadd.f32 %v268, %v481
    %v483 = vpop.f32.mrf.mxu0
    %v484 = vadd.f32 %v269, %v483
    %v485 = vpop.f32.mrf.mxu0
    %v486 = vadd.f32 %v270, %v485
    %487 = vmatprep.mubr.bf16.mxu0 0
    %488 = vmatmul.mubr.bf16.gmra.mxu0 %v385
    %v489 = vpop.f32.mrf.mxu0
    %v490 = vadd.f32 %v271, %v489
    %v491 = vpop.f32.mrf.mxu0
    %v492 = vadd.f32 %v272, %v491
    %v493 = vpop.f32.mrf.mxu0
    %v494 = vadd.f32 %v273, %v493
    %v495 = vpop.f32.mrf.mxu0
    %v496 = vadd.f32 %v274, %v495
    %497 = vmatprep.mubr.bf16.mxu0 0
    %498 = vmatmul.mubr.bf16.gmra.mxu0 %v388
    %v499 = vpop.f32.mrf.mxu0
    %v500 = vadd.f32 %v275, %v499
    %v501 = vpop.f32.mrf.mxu0
    %v502 = vadd.f32 %v276, %v501
    %v503 = vpop.f32.mrf.mxu0
    %v504 = vadd.f32 %v277, %v503
    %v505 = vpop.f32.mrf.mxu0
    %v506 = vadd.f32 %v278, %v505
    %507 = vmatprep.mubr.bf16.mxu0 0
    %508 = vmatmul.mubr.bf16.gmra.mxu0 %v391
    %v509 = vpop.f32.mrf.mxu0
    %v510 = vadd.f32 %v279, %v509
    %v511 = vpop.f32.mrf.mxu0
    %v512 = vadd.f32 %v280, %v511
    %v513 = vpop.f32.mrf.mxu0
    %v514 = vadd.f32 %v281, %v513
    %v515 = vpop.f32.mrf.mxu0
    %v516 = vadd.f32 %v282, %v515
    %517 = vmatprep.mubr.bf16.mxu0 0
    %518 = vmatmul.mubr.bf16.gmra.mxu0 %v394
    %v519 = vpop.f32.mrf.mxu0
    %v520 = vadd.f32 %v283, %v519
    %v521 = vpop.f32.mrf.mxu0
    %v522 = vadd.f32 %v284, %v521
    %v523 = vpop.f32.mrf.mxu0
    %v524 = vadd.f32 %v285, %v523
    %v525 = vpop.f32.mrf.mxu0
    %v526 = vadd.f32 %v286, %v525
    %527 = vmatprep.mubr.bf16.mxu0 0
    %528 = vmatmul.mubr.bf16.gmra.mxu0 %v397
    %v529 = vpop.f32.mrf.mxu0
    %v530 = vadd.f32 %v287, %v529
    %v531 = vpop.f32.mrf.mxu0
    %v532 = vadd.f32 %v288, %v531
    %v533 = vpop.f32.mrf.mxu0
    %v534 = vadd.f32 %v289, %v533
    %v535 = vpop.f32.mrf.mxu0
    %v536 = vadd.f32 %v290, %v535
    %537 = vmatprep.mubr.bf16.mxu0 0
    %538 = vmatmul.mubr.bf16.gmra.mxu0 %v400
    %v539 = vpop.f32.mrf.mxu0
    %v540 = vadd.f32 %v291, %v539
    %v541 = vpop.f32.mrf.mxu0
    %v542 = vadd.f32 %v292, %v541
    %v543 = vpop.f32.mrf.mxu0
    %v544 = vadd.f32 %v293, %v543
    %v545 = vpop.f32.mrf.mxu0
    %v546 = vadd.f32 %v294, %v545
    %547 = vmatprep.mubr.bf16.mxu0 0
    %548 = vmatmul.mubr.bf16.gmra.mxu0 %v403
    %v549 = vpop.f32.mrf.mxu0
    %v550 = vadd.f32 %v295, %v549
    %v551 = vpop.f32.mrf.mxu0
    %v552 = vadd.f32 %v296, %v551
    %v553 = vpop.f32.mrf.mxu0
    %v554 = vadd.f32 %v297, %v553
    %v555 = vpop.f32.mrf.mxu0
    %v556 = vadd.f32 %v298, %v555
    %557 = vmatprep.mubr.bf16.mxu0 0
    %558 = vmatmul.mubr.bf16.gmra.mxu0 %v406
    %v559 = vpop.f32.mrf.mxu0
    %v560 = vadd.f32 %v299, %v559
    %v561 = vpop.f32.mrf.mxu0
    %v562 = vadd.f32 %v300, %v561
    %v563 = vpop.f32.mrf.mxu0
    %v564 = vadd.f32 %v301, %v563
    %v565 = vpop.f32.mrf.mxu0
    %v566 = vadd.f32 %v302, %v565
    %567 = vdwg.mxu0
    %v568 = vld [vmem:[%s4] sm:$0x3]
    %v570 = vlaneseq
    %v571 = vshrl.u32 %v570, 7
    %v572 = vsub.s32 0, %v571
    %v573 = vrot.slane %v568, %v572
    %v574 = vlaneseq
    %v575 = vshrl.u32 %v574, 7
    %v576 = vsub.s32 1, %v575
    %v577 = vrot.slane %v568, %v576
    %v580 = vadd.f32 %v450, %v573
    %v581 = vadd.f32 %v452, %v577
    %v582 = vadd.f32 %v454, %v573
    %v583 = vadd.f32 %v456, %v577
    %v584 = vadd.f32 %v460, %v573
    %v585 = vadd.f32 %v462, %v577
    %v586 = vadd.f32 %v464, %v573
    %v587 = vadd.f32 %v466, %v577
    %v588 = vadd.f32 %v470, %v573
    %v589 = vadd.f32 %v472, %v577
    %v590 = vadd.f32 %v474, %v573
    %v591 = vadd.f32 %v476, %v577
    %v592 = vadd.f32 %v480, %v573
    %v593 = vadd.f32 %v482, %v577
    %v594 = vadd.f32 %v484, %v573
    %v595 = vadd.f32 %v486, %v577
    %v596 = vadd.f32 %v490, %v573
    %v597 = vadd.f32 %v492, %v577
    %v598 = vadd.f32 %v494, %v573
    %v599 = vadd.f32 %v496, %v577
    %v600 = vadd.f32 %v500, %v573
    %v601 = vadd.f32 %v502, %v577
    %v602 = vadd.f32 %v504, %v573
    %v603 = vadd.f32 %v506, %v577
    %v604 = vadd.f32 %v510, %v573
    %v605 = vadd.f32 %v512, %v577
    %v606 = vadd.f32 %v514, %v573
    %v607 = vadd.f32 %v516, %v577
    %v608 = vadd.f32 %v520, %v573
    %v609 = vadd.f32 %v522, %v577
    %v610 = vadd.f32 %v524, %v573
    %v611 = vadd.f32 %v526, %v577
    %v612 = vadd.f32 %v530, %v573
    %v613 = vadd.f32 %v532, %v577
    %v614 = vadd.f32 %v534, %v573
    %v615 = vadd.f32 %v536, %v577
    %v616 = vadd.f32 %v540, %v573
    %v617 = vadd.f32 %v542, %v577
    %v618 = vadd.f32 %v544, %v573
    %v619 = vadd.f32 %v546, %v577
    %v620 = vadd.f32 %v550, %v573
    %v621 = vadd.f32 %v552, %v577
    %v622 = vadd.f32 %v554, %v573
    %v623 = vadd.f32 %v556, %v577
    %v624 = vadd.f32 %v560, %v573
    %v625 = vadd.f32 %v562, %v577
    %v626 = vadd.f32 %v564, %v573
    %v627 = vadd.f32 %v566, %v577
    %v628 = vmax.f32 %v580, 0.0
    %v629 = vmax.f32 %v581, 0.0
    %v630 = vmax.f32 %v582, 0.0
    %v631 = vmax.f32 %v583, 0.0
    %v632 = vmax.f32 %v584, 0.0
    %v633 = vmax.f32 %v585, 0.0
    %v634 = vmax.f32 %v586, 0.0
    %v635 = vmax.f32 %v587, 0.0
    %v636 = vmax.f32 %v588, 0.0
    %v637 = vmax.f32 %v589, 0.0
    %v638 = vmax.f32 %v590, 0.0
    %v639 = vmax.f32 %v591, 0.0
    %v640 = vmax.f32 %v592, 0.0
    %v641 = vmax.f32 %v593, 0.0
    %v642 = vmax.f32 %v594, 0.0
    %v643 = vmax.f32 %v595, 0.0
    %v644 = vmax.f32 %v596, 0.0
    %v645 = vmax.f32 %v597, 0.0
    %v646 = vmax.f32 %v598, 0.0
    %v647 = vmax.f32 %v599, 0.0
    %v648 = vmax.f32 %v600, 0.0
    %v649 = vmax.f32 %v601, 0.0
    %v650 = vmax.f32 %v602, 0.0
    %v651 = vmax.f32 %v603, 0.0
    %v652 = vmax.f32 %v604, 0.0
    %v653 = vmax.f32 %v605, 0.0
    %v654 = vmax.f32 %v606, 0.0
    %v655 = vmax.f32 %v607, 0.0
    %v656 = vmax.f32 %v608, 0.0
    %v657 = vmax.f32 %v609, 0.0
    %v658 = vmax.f32 %v610, 0.0
    %v659 = vmax.f32 %v611, 0.0
    %v660 = vmax.f32 %v612, 0.0
    %v661 = vmax.f32 %v613, 0.0
    %v662 = vmax.f32 %v614, 0.0
    %v663 = vmax.f32 %v615, 0.0
    %v664 = vmax.f32 %v616, 0.0
    %v665 = vmax.f32 %v617, 0.0
    %v666 = vmax.f32 %v618, 0.0
    %v667 = vmax.f32 %v619, 0.0
    %v668 = vmax.f32 %v620, 0.0
    %v669 = vmax.f32 %v621, 0.0
    %v670 = vmax.f32 %v622, 0.0
    %v671 = vmax.f32 %v623, 0.0
    %v672 = vmax.f32 %v624, 0.0
    %v673 = vmax.f32 %v625, 0.0
    %v674 = vmax.f32 %v626, 0.0
    %v675 = vmax.f32 %v627, 0.0
    %v676 = vpack.c.bf16 %v630, %v628
    %v677 = vpack.c.bf16 %v631, %v629
    %v678 = vpack.c.bf16 %v634, %v632
    %v679 = vpack.c.bf16 %v635, %v633
    %v680 = vpack.c.bf16 %v638, %v636
    %v681 = vpack.c.bf16 %v639, %v637
    %v682 = vpack.c.bf16 %v642, %v640
    %v683 = vpack.c.bf16 %v643, %v641
    %v684 = vpack.c.bf16 %v646, %v644
    %v685 = vpack.c.bf16 %v647, %v645
    %v686 = vpack.c.bf16 %v650, %v648
    %v687 = vpack.c.bf16 %v651, %v649
    %v688 = vpack.c.bf16 %v654, %v652
    %v689 = vpack.c.bf16 %v655, %v653
    %v690 = vpack.c.bf16 %v658, %v656
    %v691 = vpack.c.bf16 %v659, %v657
    %v692 = vpack.c.bf16 %v662, %v660
    %v693 = vpack.c.bf16 %v663, %v661
    %v694 = vpack.c.bf16 %v666, %v664
    %v695 = vpack.c.bf16 %v667, %v665
    %v696 = vpack.c.bf16 %v670, %v668
    %v697 = vpack.c.bf16 %v671, %v669
    %v698 = vpack.c.bf16 %v674, %v672
    %v699 = vpack.c.bf16 %v675, %v673
    %v700 = vld [vmem:[%s5] sm:$0xff]
    %v701 = vld [vmem:[%s5 + $0x8] sm:$0xff]
    %v702 = vld [vmem:[%s5 + $0x10] sm:$0xff]
    %v703 = vld [vmem:[%s5 + $0x18] sm:$0xff]
    %v704 = vld [vmem:[%s5 + $0x20] sm:$0xff]
    %v705 = vld [vmem:[%s5 + $0x28] sm:$0xff]
    %v706 = vld [vmem:[%s5 + $0x30] sm:$0xff]
    %v707 = vld [vmem:[%s5 + $0x38] sm:$0xff]
    %v708 = vld [vmem:[%s5 + $0x40] sm:$0xff]
    %v709 = vld [vmem:[%s5 + $0x48] sm:$0xff]
    %v710 = vld [vmem:[%s5 + $0x50] sm:$0xff]
    %v711 = vld [vmem:[%s5 + $0x58] sm:$0xff]
    %v712 = vld [vmem:[%s5 + $0x60] sm:$0xff]
    %v713 = vld [vmem:[%s5 + $0x68] sm:$0xff]
    %v714 = vld [vmem:[%s5 + $0x70] sm:$0xff]
    %v715 = vld [vmem:[%s5 + $0x78] sm:$0xff]
    %v716 = vld [vmem:[%s5 + $0x80] sm:$0xff]
    %v717 = vld [vmem:[%s5 + $0x88] sm:$0xff]
    %v718 = vld [vmem:[%s5 + $0x90] sm:$0xff]
    %v719 = vld [vmem:[%s5 + $0x98] sm:$0xff]
    %v720 = vld [vmem:[%s5 + $0xa0] sm:$0xff]
    %v721 = vld [vmem:[%s5 + $0xa8] sm:$0xff]
    %v722 = vld [vmem:[%s5 + $0xb0] sm:$0xff]
    %v723 = vld [vmem:[%s5 + $0xb8] sm:$0xff]
    %v724 = vld [vmem:[%s5 + $0xc0] sm:$0xff]
    %v725 = vld [vmem:[%s5 + $0xc8] sm:$0xff]
    %v726 = vld [vmem:[%s5 + $0xd0] sm:$0xff]
    %v727 = vld [vmem:[%s5 + $0xd8] sm:$0xff]
    %v728 = vld [vmem:[%s5 + $0xe0] sm:$0xff]
    %v729 = vld [vmem:[%s5 + $0xe8] sm:$0xff]
    %v730 = vld [vmem:[%s5 + $0xf0] sm:$0xff]
    %v731 = vld [vmem:[%s5 + $0xf8] sm:$0xff]
    %v732 = vld [vmem:[%s6] sm:$0x3]
    %v734 = vlaneseq
    %v735 = vshrl.u32 %v734, 7
    %v736 = vsub.s32 0, %v735
    %v737 = vrot.slane %v732, %v736
    %v738 = vlaneseq
    %v739 = vshrl.u32 %v738, 7
    %v740 = vsub.s32 1, %v739
    %v741 = vrot.slane %v732, %v740
    %v776 = vunpack.c.l.b16 %v700
    %v777 = vunpack.c.h.b16 %v700
    %v778 = vunpack.c.l.b16 %v701
    %v779 = vunpack.c.h.b16 %v701
    %v780 = vunpack.c.l.b16 %v702
    %v781 = vunpack.c.h.b16 %v702
    %v782 = vunpack.c.l.b16 %v703
    %v783 = vunpack.c.h.b16 %v703
    %v784 = vunpack.c.l.b16 %v704
    %v785 = vunpack.c.h.b16 %v704
    %v786 = vunpack.c.l.b16 %v705
    %v787 = vunpack.c.h.b16 %v705
    %v788 = vunpack.c.l.b16 %v706
    %v789 = vunpack.c.h.b16 %v706
    %v790 = vunpack.c.l.b16 %v707
    %v791 = vunpack.c.h.b16 %v707
    %v792 = vunpack.c.l.b16 %v708
    %v793 = vunpack.c.h.b16 %v708
    %v794 = vunpack.c.l.b16 %v709
    %v795 = vunpack.c.h.b16 %v709
    %v796 = vunpack.c.l.b16 %v710
    %v797 = vunpack.c.h.b16 %v710
    %v798 = vunpack.c.l.b16 %v711
    %v799 = vunpack.c.h.b16 %v711
    %v800 = vunpack.c.l.b16 %v712
    %v801 = vunpack.c.h.b16 %v712
    %v802 = vunpack.c.l.b16 %v713
    %v803 = vunpack.c.h.b16 %v713
    %v804 = vunpack.c.l.b16 %v714
    %v805 = vunpack.c.h.b16 %v714
    %v806 = vunpack.c.l.b16 %v715
    %v807 = vunpack.c.h.b16 %v715
    %v808 = vunpack.c.l.b16 %v716
    %v809 = vunpack.c.h.b16 %v716
    %v810 = vunpack.c.l.b16 %v717
    %v811 = vunpack.c.h.b16 %v717
    %v812 = vunpack.c.l.b16 %v718
    %v813 = vunpack.c.h.b16 %v718
    %v814 = vunpack.c.l.b16 %v719
    %v815 = vunpack.c.h.b16 %v719
    %v816 = vunpack.c.l.b16 %v720
    %v817 = vunpack.c.h.b16 %v720
    %v818 = vunpack.c.l.b16 %v721
    %v819 = vunpack.c.h.b16 %v721
    %v820 = vunpack.c.l.b16 %v722
    %v821 = vunpack.c.h.b16 %v722
    %v822 = vunpack.c.l.b16 %v723
    %v823 = vunpack.c.h.b16 %v723
    %v824 = vunpack.c.l.b16 %v724
    %v825 = vunpack.c.h.b16 %v724
    %v826 = vunpack.c.l.b16 %v725
    %v827 = vunpack.c.h.b16 %v725
    %v828 = vunpack.c.l.b16 %v726
    %v829 = vunpack.c.h.b16 %v726
    %v830 = vunpack.c.l.b16 %v727
    %v831 = vunpack.c.h.b16 %v727
    %v832 = vunpack.c.l.b16 %v728
    %v833 = vunpack.c.h.b16 %v728
    %v834 = vunpack.c.l.b16 %v729
    %v835 = vunpack.c.h.b16 %v729
    %v836 = vunpack.c.l.b16 %v730
    %v837 = vunpack.c.h.b16 %v730
    %v838 = vunpack.c.l.b16 %v731
    %v839 = vunpack.c.h.b16 %v731
    %v840 = vpack.c.b16 %v778, %v776
    %v841 = vpack.c.b16 %v779, %v777
    %v842 = vpack.c.b16 %v782, %v780
    %v843 = vpack.c.b16 %v783, %v781
    %v844 = vpack.c.b16 %v786, %v784
    %v845 = vpack.c.b16 %v787, %v785
    %v846 = vpack.c.b16 %v790, %v788
    %v847 = vpack.c.b16 %v791, %v789
    %v848 = vpack.c.b16 %v794, %v792
    %v849 = vpack.c.b16 %v795, %v793
    %v850 = vpack.c.b16 %v798, %v796
    %v851 = vpack.c.b16 %v799, %v797
    %v852 = vpack.c.b16 %v802, %v800
    %v853 = vpack.c.b16 %v803, %v801
    %v854 = vpack.c.b16 %v806, %v804
    %v855 = vpack.c.b16 %v807, %v805
    %v856 = vpack.c.b16 %v810, %v808
    %v857 = vpack.c.b16 %v811, %v809
    %v858 = vpack.c.b16 %v814, %v812
    %v859 = vpack.c.b16 %v815, %v813
    %v860 = vpack.c.b16 %v818, %v816
    %v861 = vpack.c.b16 %v819, %v817
    %v862 = vpack.c.b16 %v822, %v820
    %v863 = vpack.c.b16 %v823, %v821
    %v864 = vpack.c.b16 %v826, %v824
    %v865 = vpack.c.b16 %v827, %v825
    %v866 = vpack.c.b16 %v830, %v828
    %v867 = vpack.c.b16 %v831, %v829
    %v868 = vpack.c.b16 %v834, %v832
    %v869 = vpack.c.b16 %v835, %v833
    %v870 = vpack.c.b16 %v838, %v836
    %v871 = vpack.c.b16 %v839, %v837
    %904 = vmatprep.subr.bf16.mxu0 %v855
    %905 = vmatpush1.bf16.msra.mxu0 %v854
    %906 = vmatprep.subr.bf16.mxu0 %v853
    %907 = vmatpush1.bf16.msra.mxu0 %v852
    %908 = vmatprep.subr.bf16.mxu0 %v851
    %909 = vmatpush1.bf16.msra.mxu0 %v850
    %910 = vmatprep.subr.bf16.mxu0 %v849
    %911 = vmatpush1.bf16.msra.mxu0 %v848
    %912 = vmatprep.subr.bf16.mxu0 %v847
    %913 = vmatpush1.bf16.msra.mxu0 %v846
    %914 = vmatprep.subr.bf16.mxu0 %v845
    %915 = vmatpush1.bf16.msra.mxu0 %v844
    %916 = vmatprep.subr.bf16.mxu0 %v843
    %917 = vmatpush1.bf16.msra.mxu0 %v842
    %918 = vmatprep.subr.bf16.mxu0 %v841
    %919 = vmatpush1.bf16.msra.mxu0 %v840
    %920 = vmatprep.subr.bf16.mxu0 %v871
    %921 = vmatpush2.bf16.msra.mxu0 %v870
    %922 = vmatprep.subr.bf16.mxu0 %v869
    %923 = vmatpush2.bf16.msra.mxu0 %v868
    %924 = vmatprep.subr.bf16.mxu0 %v867
    %925 = vmatpush2.bf16.msra.mxu0 %v866
    %926 = vmatprep.subr.bf16.mxu0 %v865
    %927 = vmatpush2.bf16.msra.mxu0 %v864
    %928 = vmatprep.subr.bf16.mxu0 %v863
    %929 = vmatpush2.bf16.msra.mxu0 %v862
    %930 = vmatprep.subr.bf16.mxu0 %v861
    %931 = vmatpush2.bf16.msra.mxu0 %v860
    %932 = vmatprep.subr.bf16.mxu0 %v859
    %933 = vmatpush2.bf16.msra.mxu0 %v858
    %934 = vmatprep.subr.bf16.mxu0 %v857
    %935 = vmatpush2.bf16.msra.mxu0 %v856
    %936 = vmatprep.mubr.bf16.mxu0 %v677
    %937 = vmatmul.mubr.bf16.gmra.mxu0 %v676
    %v938 = vpop.f32.mrf.mxu0
    %v939 = vadd.f32 %v737, %v938
    %v940 = vpop.f32.mrf.mxu0
    %v941 = vadd.f32 %v741, %v940
    %v942 = vpop.f32.mrf.mxu0
    %v943 = vadd.f32 %v737, %v942
    %v944 = vpop.f32.mrf.mxu0
    %v945 = vadd.f32 %v741, %v944
    %946 = vmatprep.mubr.bf16.mxu0 %v679
    %947 = vmatmul.mubr.bf16.gmra.mxu0 %v678
    %v948 = vpop.f32.mrf.mxu0
    %v949 = vadd.f32 %v737, %v948
    %v950 = vpop.f32.mrf.mxu0
    %v951 = vadd.f32 %v741, %v950
    %v952 = vpop.f32.mrf.mxu0
    %v953 = vadd.f32 %v737, %v952
    %v954 = vpop.f32.mrf.mxu0
    %v955 = vadd.f32 %v741, %v954
    %956 = vmatprep.mubr.bf16.mxu0 %v681
    %957 = vmatmul.mubr.bf16.gmra.mxu0 %v680
    %v958 = vpop.f32.mrf.mxu0
    %v959 = vadd.f32 %v737, %v958
    %v960 = vpop.f32.mrf.mxu0
    %v961 = vadd.f32 %v741, %v960
    %v962 = vpop.f32.mrf.mxu0
    %v963 = vadd.f32 %v737, %v962
    %v964 = vpop.f32.mrf.mxu0
    %v965 = vadd.f32 %v741, %v964
    %966 = vmatprep.mubr.bf16.mxu0 %v683
    %967 = vmatmul.mubr.bf16.gmra.mxu0 %v682
    %v968 = vpop.f32.mrf.mxu0
    %v969 = vadd.f32 %v737, %v968
    %v970 = vpop.f32.mrf.mxu0
    %v971 = vadd.f32 %v741, %v970
    %v972 = vpop.f32.mrf.mxu0
    %v973 = vadd.f32 %v737, %v972
    %v974 = vpop.f32.mrf.mxu0
    %v975 = vadd.f32 %v741, %v974
    %976 = vmatprep.mubr.bf16.mxu0 %v685
    %977 = vmatmul.mubr.bf16.gmra.mxu0 %v684
    %v978 = vpop.f32.mrf.mxu0
    %v979 = vadd.f32 %v737, %v978
    %v980 = vpop.f32.mrf.mxu0
    %v981 = vadd.f32 %v741, %v980
    %v982 = vpop.f32.mrf.mxu0
    %v983 = vadd.f32 %v737, %v982
    %v984 = vpop.f32.mrf.mxu0
    %v985 = vadd.f32 %v741, %v984
    %986 = vmatprep.mubr.bf16.mxu0 %v687
    %987 = vmatmul.mubr.bf16.gmra.mxu0 %v686
    %v988 = vpop.f32.mrf.mxu0
    %v989 = vadd.f32 %v737, %v988
    %v990 = vpop.f32.mrf.mxu0
    %v991 = vadd.f32 %v741, %v990
    %v992 = vpop.f32.mrf.mxu0
    %v993 = vadd.f32 %v737, %v992
    %v994 = vpop.f32.mrf.mxu0
    %v995 = vadd.f32 %v741, %v994
    %996 = vmatprep.mubr.bf16.mxu0 %v689
    %997 = vmatmul.mubr.bf16.gmra.mxu0 %v688
    %v998 = vpop.f32.mrf.mxu0
    %v999 = vadd.f32 %v737, %v998
    %v1000 = vpop.f32.mrf.mxu0
    %v1001 = vadd.f32 %v741, %v1000
    %v1002 = vpop.f32.mrf.mxu0
    %v1003 = vadd.f32 %v737, %v1002
    %v1004 = vpop.f32.mrf.mxu0
    %v1005 = vadd.f32 %v741, %v1004
    %1006 = vmatprep.mubr.bf16.mxu0 %v691
    %1007 = vmatmul.mubr.bf16.gmra.mxu0 %v690
    %v1008 = vpop.f32.mrf.mxu0
    %v1009 = vadd.f32 %v737, %v1008
    %v1010 = vpop.f32.mrf.mxu0
    %v1011 = vadd.f32 %v741, %v1010
    %v1012 = vpop.f32.mrf.mxu0
    %v1013 = vadd.f32 %v737, %v1012
    %v1014 = vpop.f32.mrf.mxu0
    %v1015 = vadd.f32 %v741, %v1014
    %1016 = vmatprep.mubr.bf16.mxu0 %v693
    %1017 = vmatmul.mubr.bf16.gmra.mxu0 %v692
    %v1018 = vpop.f32.mrf.mxu0
    %v1019 = vadd.f32 %v737, %v1018
    %v1020 = vpop.f32.mrf.mxu0
    %v1021 = vadd.f32 %v741, %v1020
    %v1022 = vpop.f32.mrf.mxu0
    %v1023 = vadd.f32 %v737, %v1022
    %v1024 = vpop.f32.mrf.mxu0
    %v1025 = vadd.f32 %v741, %v1024
    %1026 = vmatprep.mubr.bf16.mxu0 %v695
    %1027 = vmatmul.mubr.bf16.gmra.mxu0 %v694
    %v1028 = vpop.f32.mrf.mxu0
    %v1029 = vadd.f32 %v737, %v1028
    %v1030 = vpop.f32.mrf.mxu0
    %v1031 = vadd.f32 %v741, %v1030
    %v1032 = vpop.f32.mrf.mxu0
    %v1033 = vadd.f32 %v737, %v1032
    %v1034 = vpop.f32.mrf.mxu0
    %v1035 = vadd.f32 %v741, %v1034
    %1036 = vmatprep.mubr.bf16.mxu0 %v697
    %1037 = vmatmul.mubr.bf16.gmra.mxu0 %v696
    %v1038 = vpop.f32.mrf.mxu0
    %v1039 = vadd.f32 %v737, %v1038
    %v1040 = vpop.f32.mrf.mxu0
    %v1041 = vadd.f32 %v741, %v1040
    %v1042 = vpop.f32.mrf.mxu0
    %v1043 = vadd.f32 %v737, %v1042
    %v1044 = vpop.f32.mrf.mxu0
    %v1045 = vadd.f32 %v741, %v1044
    %1046 = vmatprep.mubr.bf16.mxu0 %v699
    %1047 = vmatmul.mubr.bf16.gmra.mxu0 %v698
    %v1048 = vpop.f32.mrf.mxu0
    %v1049 = vadd.f32 %v737, %v1048
    %v1050 = vpop.f32.mrf.mxu0
    %v1051 = vadd.f32 %v741, %v1050
    %v1052 = vpop.f32.mrf.mxu0
    %v1053 = vadd.f32 %v737, %v1052
    %v1054 = vpop.f32.mrf.mxu0
    %v1055 = vadd.f32 %v741, %v1054
    %1056 = vdwg.mxu0
    %v1057 = vmax.f32 %v939, 0.0
    %v1058 = vmax.f32 %v941, 0.0
    %v1059 = vmax.f32 %v943, 0.0
    %v1060 = vmax.f32 %v945, 0.0
    %v1061 = vmax.f32 %v949, 0.0
    %v1062 = vmax.f32 %v951, 0.0
    %v1063 = vmax.f32 %v953, 0.0
    %v1064 = vmax.f32 %v955, 0.0
    %v1065 = vmax.f32 %v959, 0.0
    %v1066 = vmax.f32 %v961, 0.0
    %v1067 = vmax.f32 %v963, 0.0
    %v1068 = vmax.f32 %v965, 0.0
    %v1069 = vmax.f32 %v969, 0.0
    %v1070 = vmax.f32 %v971, 0.0
    %v1071 = vmax.f32 %v973, 0.0
    %v1072 = vmax.f32 %v975, 0.0
    %v1073 = vmax.f32 %v979, 0.0
    %v1074 = vmax.f32 %v981, 0.0
    %v1075 = vmax.f32 %v983, 0.0
    %v1076 = vmax.f32 %v985, 0.0
    %v1077 = vmax.f32 %v989, 0.0
    %v1078 = vmax.f32 %v991, 0.0
    %v1079 = vmax.f32 %v993, 0.0
    %v1080 = vmax.f32 %v995, 0.0
    %v1081 = vmax.f32 %v999, 0.0
    %v1082 = vmax.f32 %v1001, 0.0
    %v1083 = vmax.f32 %v1003, 0.0
    %v1084 = vmax.f32 %v1005, 0.0
    %v1085 = vmax.f32 %v1009, 0.0
    %v1086 = vmax.f32 %v1011, 0.0
    %v1087 = vmax.f32 %v1013, 0.0
    %v1088 = vmax.f32 %v1015, 0.0
    %v1089 = vmax.f32 %v1019, 0.0
    %v1090 = vmax.f32 %v1021, 0.0
    %v1091 = vmax.f32 %v1023, 0.0
    %v1092 = vmax.f32 %v1025, 0.0
    %v1093 = vmax.f32 %v1029, 0.0
    %v1094 = vmax.f32 %v1031, 0.0
    %v1095 = vmax.f32 %v1033, 0.0
    %v1096 = vmax.f32 %v1035, 0.0
    %v1097 = vmax.f32 %v1039, 0.0
    %v1098 = vmax.f32 %v1041, 0.0
    %v1099 = vmax.f32 %v1043, 0.0
    %v1100 = vmax.f32 %v1045, 0.0
    %v1101 = vmax.f32 %v1049, 0.0
    %v1102 = vmax.f32 %v1051, 0.0
    %v1103 = vmax.f32 %v1053, 0.0
    %v1104 = vmax.f32 %v1055, 0.0
    %v1105 = vpack.c.bf16 %v1059, %v1057
    %v1106 = vpack.c.bf16 %v1060, %v1058
    %v1107 = vpack.c.bf16 %v1063, %v1061
    %v1108 = vpack.c.bf16 %v1064, %v1062
    %v1109 = vpack.c.bf16 %v1067, %v1065
    %v1110 = vpack.c.bf16 %v1068, %v1066
    %v1111 = vpack.c.bf16 %v1071, %v1069
    %v1112 = vpack.c.bf16 %v1072, %v1070
    %v1113 = vpack.c.bf16 %v1075, %v1073
    %v1114 = vpack.c.bf16 %v1076, %v1074
    %v1115 = vpack.c.bf16 %v1079, %v1077
    %v1116 = vpack.c.bf16 %v1080, %v1078
    %v1117 = vpack.c.bf16 %v1083, %v1081
    %v1118 = vpack.c.bf16 %v1084, %v1082
    %v1119 = vpack.c.bf16 %v1087, %v1085
    %v1120 = vpack.c.bf16 %v1088, %v1086
    %v1121 = vpack.c.bf16 %v1091, %v1089
    %v1122 = vpack.c.bf16 %v1092, %v1090
    %v1123 = vpack.c.bf16 %v1095, %v1093
    %v1124 = vpack.c.bf16 %v1096, %v1094
    %v1125 = vpack.c.bf16 %v1099, %v1097
    %v1126 = vpack.c.bf16 %v1100, %v1098
    %v1127 = vpack.c.bf16 %v1103, %v1101
    %v1128 = vpack.c.bf16 %v1104, %v1102
    %v1129 = vld [vmem:[#allocation2] sm:$0xf]
    %v1130 = vld [vmem:[#allocation2 + $0x4] sm:$0xf]
    %v1131 = vld [vmem:[#allocation2 + $0x8] sm:$0xf]
    %v1132 = vld [vmem:[#allocation2 + $0xc] sm:$0xf]
    %v1133 = vld [vmem:[#allocation2 + $0x10] sm:$0xf]
    %v1134 = vld [vmem:[#allocation2 + $0x14] sm:$0xf]
    %v1135 = vld [vmem:[#allocation2 + $0x18] sm:$0xf]
    %v1136 = vld [vmem:[#allocation2 + $0x1c] sm:$0xf]
    %v1137 = vld [vmem:[#allocation2 + $0x20] sm:$0xf]
    %v1138 = vld [vmem:[#allocation2 + $0x24] sm:$0xf]
    %v1139 = vld [vmem:[#allocation2 + $0x28] sm:$0xf]
    %v1140 = vld [vmem:[#allocation2 + $0x2c] sm:$0xf]
    %v1141 = vld [vmem:[#allocation2 + $0x30] sm:$0xf]
    %v1142 = vld [vmem:[#allocation2 + $0x34] sm:$0xf]
    %v1143 = vld [vmem:[#allocation2 + $0x38] sm:$0xf]
    %v1144 = vld [vmem:[#allocation2 + $0x3c] sm:$0xf]
    %v1145 = vld [vmem:[#allocation2 + $0x40] sm:$0xf]
    %v1146 = vld [vmem:[#allocation2 + $0x44] sm:$0xf]
    %v1147 = vld [vmem:[#allocation2 + $0x48] sm:$0xf]
    %v1148 = vld [vmem:[#allocation2 + $0x4c] sm:$0xf]
    %v1149 = vld [vmem:[#allocation2 + $0x50] sm:$0xf]
    %v1150 = vld [vmem:[#allocation2 + $0x54] sm:$0xf]
    %v1151 = vld [vmem:[#allocation2 + $0x58] sm:$0xf]
    %v1152 = vld [vmem:[#allocation2 + $0x5c] sm:$0xf]
    %v1153 = vld [vmem:[#allocation2 + $0x60] sm:$0xf]
    %v1154 = vld [vmem:[#allocation2 + $0x64] sm:$0xf]
    %v1155 = vld [vmem:[#allocation2 + $0x68] sm:$0xf]
    %v1156 = vld [vmem:[#allocation2 + $0x6c] sm:$0xf]
    %v1157 = vld [vmem:[#allocation2 + $0x70] sm:$0xf]
    %v1158 = vld [vmem:[#allocation2 + $0x74] sm:$0xf]
    %v1159 = vld [vmem:[#allocation2 + $0x78] sm:$0xf]
    %v1160 = vld [vmem:[#allocation2 + $0x7c] sm:$0xf]
    %v1161 = vld [vmem:[%s8] sm:$0x1]
    %v1163 = vlaneseq
    %v1164 = vshrl.u32 %v1163, 7
    %v1165 = vsub.s32 0, %v1164
    %v1166 = vrot.slane %v1161, %v1165
    %v1200 = vunpack.c.l.b16 %v1129
    %v1201 = vunpack.c.l.b16 %v1130
    %v1202 = vunpack.c.l.b16 %v1131
    %v1203 = vunpack.c.l.b16 %v1132
    %v1204 = vunpack.c.l.b16 %v1133
    %v1205 = vunpack.c.l.b16 %v1134
    %v1206 = vunpack.c.l.b16 %v1135
    %v1207 = vunpack.c.l.b16 %v1136
    %v1208 = vunpack.c.l.b16 %v1137
    %v1209 = vunpack.c.l.b16 %v1138
    %v1210 = vunpack.c.l.b16 %v1139
    %v1211 = vunpack.c.l.b16 %v1140
    %v1212 = vunpack.c.l.b16 %v1141
    %v1213 = vunpack.c.l.b16 %v1142
    %v1214 = vunpack.c.l.b16 %v1143
    %v1215 = vunpack.c.l.b16 %v1144
    %v1216 = vunpack.c.l.b16 %v1145
    %v1217 = vunpack.c.l.b16 %v1146
    %v1218 = vunpack.c.l.b16 %v1147
    %v1219 = vunpack.c.l.b16 %v1148
    %v1220 = vunpack.c.l.b16 %v1149
    %v1221 = vunpack.c.l.b16 %v1150
    %v1222 = vunpack.c.l.b16 %v1151
    %v1223 = vunpack.c.l.b16 %v1152
    %v1224 = vunpack.c.l.b16 %v1153
    %v1225 = vunpack.c.l.b16 %v1154
    %v1226 = vunpack.c.l.b16 %v1155
    %v1227 = vunpack.c.l.b16 %v1156
    %v1228 = vunpack.c.l.b16 %v1157
    %v1229 = vunpack.c.l.b16 %v1158
    %v1230 = vunpack.c.l.b16 %v1159
    %v1231 = vunpack.c.l.b16 %v1160
    %v1232 = vpack.c.b16 %v1201, %v1200
    %v1233 = vpack.c.b16 %v1203, %v1202
    %v1234 = vpack.c.b16 %v1205, %v1204
    %v1235 = vpack.c.b16 %v1207, %v1206
    %v1236 = vpack.c.b16 %v1209, %v1208
    %v1237 = vpack.c.b16 %v1211, %v1210
    %v1238 = vpack.c.b16 %v1213, %v1212
    %v1239 = vpack.c.b16 %v1215, %v1214
    %v1240 = vpack.c.b16 %v1217, %v1216
    %v1241 = vpack.c.b16 %v1219, %v1218
    %v1242 = vpack.c.b16 %v1221, %v1220
    %v1243 = vpack.c.b16 %v1223, %v1222
    %v1244 = vpack.c.b16 %v1225, %v1224
    %v1245 = vpack.c.b16 %v1227, %v1226
    %v1246 = vpack.c.b16 %v1229, %v1228
    %v1247 = vpack.c.b16 %v1231, %v1230
    %1264 = vmatprep.subr.bf16.mxu0 0
    %1265 = vmatpush1.bf16.msra.mxu0 %v1239
    %1266 = vmatprep.subr.bf16.mxu0 0
    %1267 = vmatpush1.bf16.msra.mxu0 %v1238
    %1268 = vmatprep.subr.bf16.mxu0 0
    %1269 = vmatpush1.bf16.msra.mxu0 %v1237
    %1270 = vmatprep.subr.bf16.mxu0 0
    %1271 = vmatpush1.bf16.msra.mxu0 %v1236
    %1272 = vmatprep.subr.bf16.mxu0 0
    %1273 = vmatpush1.bf16.msra.mxu0 %v1235
    %1274 = vmatprep.subr.bf16.mxu0 0
    %1275 = vmatpush1.bf16.msra.mxu0 %v1234
    %1276 = vmatprep.subr.bf16.mxu0 0
    %1277 = vmatpush1.bf16.msra.mxu0 %v1233
    %1278 = vmatprep.subr.bf16.mxu0 0
    %1279 = vmatpush1.bf16.msra.mxu0 %v1232
    %1280 = vmatprep.subr.bf16.mxu0 0
    %1281 = vmatpush2.bf16.msra.mxu0 %v1247
    %1282 = vmatprep.subr.bf16.mxu0 0
    %1283 = vmatpush2.bf16.msra.mxu0 %v1246
    %1284 = vmatprep.subr.bf16.mxu0 0
    %1285 = vmatpush2.bf16.msra.mxu0 %v1245
    %1286 = vmatprep.subr.bf16.mxu0 0
    %1287 = vmatpush2.bf16.msra.mxu0 %v1244
    %1288 = vmatprep.subr.bf16.mxu0 0
    %1289 = vmatpush2.bf16.msra.mxu0 %v1243
    %1290 = vmatprep.subr.bf16.mxu0 0
    %1291 = vmatpush2.bf16.msra.mxu0 %v1242
    %1292 = vmatprep.subr.bf16.mxu0 0
    %1293 = vmatpush2.bf16.msra.mxu0 %v1241
    %1294 = vmatprep.subr.bf16.mxu0 0
    %1295 = vmatpush2.bf16.msra.mxu0 %v1240
    %1296 = vmatprep.mubr.bf16.mxu0 %v1106
    %1297 = vmatmul.mubr.bf16.gmra.mxu0 %v1105
    %v1298 = vpop.f32.mrf.mxu0
    %v1299 = vadd.f32 %v1166, %v1298
    %v1300 = vpop.f32.mrf.mxu0
    %v1301 = vpop.f32.mrf.mxu0
    %v1302 = vadd.f32 %v1166, %v1301
    %v1303 = vpop.f32.mrf.mxu0
    %1304 = vmatprep.mubr.bf16.mxu0 %v1108
    %1305 = vmatmul.mubr.bf16.gmra.mxu0 %v1107
    %v1306 = vpop.f32.mrf.mxu0
    %v1307 = vadd.f32 %v1166, %v1306
    %v1308 = vpop.f32.mrf.mxu0
    %v1309 = vpop.f32.mrf.mxu0
    %v1310 = vadd.f32 %v1166, %v1309
    %v1311 = vpop.f32.mrf.mxu0
    %1312 = vmatprep.mubr.bf16.mxu0 %v1110
    %1313 = vmatmul.mubr.bf16.gmra.mxu0 %v1109
    %v1314 = vpop.f32.mrf.mxu0
    %v1315 = vadd.f32 %v1166, %v1314
    %v1316 = vpop.f32.mrf.mxu0
    %v1317 = vpop.f32.mrf.mxu0
    %v1318 = vadd.f32 %v1166, %v1317
    %v1319 = vpop.f32.mrf.mxu0
    %1320 = vmatprep.mubr.bf16.mxu0 %v1112
    %1321 = vmatmul.mubr.bf16.gmra.mxu0 %v1111
    %v1322 = vpop.f32.mrf.mxu0
    %v1323 = vadd.f32 %v1166, %v1322
    %v1324 = vpop.f32.mrf.mxu0
    %v1325 = vpop.f32.mrf.mxu0
    %v1326 = vadd.f32 %v1166, %v1325
    %v1327 = vpop.f32.mrf.mxu0
    %1328 = vmatprep.mubr.bf16.mxu0 %v1114
    %1329 = vmatmul.mubr.bf16.gmra.mxu0 %v1113
    %v1330 = vpop.f32.mrf.mxu0
    %v1331 = vadd.f32 %v1166, %v1330
    %v1332 = vpop.f32.mrf.mxu0
    %v1333 = vpop.f32.mrf.mxu0
    %v1334 = vadd.f32 %v1166, %v1333
    %v1335 = vpop.f32.mrf.mxu0
    %1336 = vmatprep.mubr.bf16.mxu0 %v1116
    %1337 = vmatmul.mubr.bf16.gmra.mxu0 %v1115
    %v1338 = vpop.f32.mrf.mxu0
    %v1339 = vadd.f32 %v1166, %v1338
    %v1340 = vpop.f32.mrf.mxu0
    %v1341 = vpop.f32.mrf.mxu0
    %v1342 = vadd.f32 %v1166, %v1341
    %v1343 = vpop.f32.mrf.mxu0
    %1344 = vmatprep.mubr.bf16.mxu0 %v1118
    %1345 = vmatmul.mubr.bf16.gmra.mxu0 %v1117
    %v1346 = vpop.f32.mrf.mxu0
    %v1347 = vadd.f32 %v1166, %v1346
    %v1348 = vpop.f32.mrf.mxu0
    %v1349 = vpop.f32.mrf.mxu0
    %v1350 = vadd.f32 %v1166, %v1349
    %v1351 = vpop.f32.mrf.mxu0
    %1352 = vmatprep.mubr.bf16.mxu0 %v1120
    %1353 = vmatmul.mubr.bf16.gmra.mxu0 %v1119
    %v1354 = vpop.f32.mrf.mxu0
    %v1355 = vadd.f32 %v1166, %v1354
    %v1356 = vpop.f32.mrf.mxu0
    %v1357 = vpop.f32.mrf.mxu0
    %v1358 = vadd.f32 %v1166, %v1357
    %v1359 = vpop.f32.mrf.mxu0
    %1360 = vmatprep.mubr.bf16.mxu0 %v1122
    %1361 = vmatmul.mubr.bf16.gmra.mxu0 %v1121
    %v1362 = vpop.f32.mrf.mxu0
    %v1363 = vadd.f32 %v1166, %v1362
    %v1364 = vpop.f32.mrf.mxu0
    %v1365 = vpop.f32.mrf.mxu0
    %v1366 = vadd.f32 %v1166, %v1365
    %v1367 = vpop.f32.mrf.mxu0
    %1368 = vmatprep.mubr.bf16.mxu0 %v1124
    %1369 = vmatmul.mubr.bf16.gmra.mxu0 %v1123
    %v1370 = vpop.f32.mrf.mxu0
    %v1371 = vadd.f32 %v1166, %v1370
    %v1372 = vpop.f32.mrf.mxu0
    %v1373 = vpop.f32.mrf.mxu0
    %v1374 = vadd.f32 %v1166, %v1373
    %v1375 = vpop.f32.mrf.mxu0
    %1376 = vmatprep.mubr.bf16.mxu0 %v1126
    %1377 = vmatmul.mubr.bf16.gmra.mxu0 %v1125
    %v1378 = vpop.f32.mrf.mxu0
    %v1379 = vadd.f32 %v1166, %v1378
    %v1380 = vpop.f32.mrf.mxu0
    %v1381 = vpop.f32.mrf.mxu0
    %v1382 = vadd.f32 %v1166, %v1381
    %v1383 = vpop.f32.mrf.mxu0
    %1384 = vmatprep.mubr.bf16.mxu0 %v1128
    %1385 = vmatmul.mubr.bf16.gmra.mxu0 %v1127
    %v1386 = vpop.f32.mrf.mxu0
    %v1387 = vadd.f32 %v1166, %v1386
    %v1388 = vpop.f32.mrf.mxu0
    %v1389 = vpop.f32.mrf.mxu0
    %v1390 = vadd.f32 %v1166, %v1389
    %v1391 = vpop.f32.mrf.mxu0
    %1392 = vdwg.mxu0
    %v1393 = vpack.c.bf16 %v1302, %v1299
    %v1394 = vpack.c.bf16 %v1310, %v1307
    %v1395 = vpack.c.bf16 %v1318, %v1315
    %v1396 = vpack.c.bf16 %v1326, %v1323
    %v1397 = vpack.c.bf16 %v1334, %v1331
    %v1398 = vpack.c.bf16 %v1342, %v1339
    %v1399 = vpack.c.bf16 %v1350, %v1347
    %v1400 = vpack.c.bf16 %v1358, %v1355
    %v1401 = vpack.c.bf16 %v1366, %v1363
    %v1402 = vpack.c.bf16 %v1374, %v1371
    %v1403 = vpack.c.bf16 %v1382, %v1379
    %v1404 = vpack.c.bf16 %v1390, %v1387
    %v1417 = vunpack.c.l.b16 %v1393
    %v1418 = vunpack.c.h.b16 %v1393
    %v1419 = vunpack.c.l.b16 %v1394
    %v1420 = vunpack.c.h.b16 %v1394
    %v1421 = vunpack.c.l.b16 %v1395
    %v1422 = vunpack.c.h.b16 %v1395
    %v1423 = vunpack.c.l.b16 %v1396
    %v1424 = vunpack.c.h.b16 %v1396
    %v1425 = vunpack.c.l.b16 %v1397
    %v1426 = vunpack.c.h.b16 %v1397
    %v1427 = vunpack.c.l.b16 %v1398
    %v1428 = vunpack.c.h.b16 %v1398
    %v1429 = vunpack.c.l.b16 %v1399
    %v1430 = vunpack.c.h.b16 %v1399
    %v1431 = vunpack.c.l.b16 %v1400
    %v1432 = vunpack.c.h.b16 %v1400
    %v1433 = vunpack.c.l.b16 %v1401
    %v1434 = vunpack.c.h.b16 %v1401
    %v1435 = vunpack.c.l.b16 %v1402
    %v1436 = vunpack.c.h.b16 %v1402
    %v1437 = vunpack.c.l.b16 %v1403
    %v1438 = vunpack.c.h.b16 %v1403
    %v1439 = vunpack.c.l.b16 %v1404
    %v1440 = vunpack.c.h.b16 %v1404
    %v1441 = vpack.c.b16 %v1417, %v1417
    %v1442 = vpack.c.b16 %v1418, %v1418
    %v1443 = vpack.c.b16 %v1419, %v1419
    %v1444 = vpack.c.b16 %v1420, %v1420
    %v1445 = vpack.c.b16 %v1421, %v1421
    %v1446 = vpack.c.b16 %v1422, %v1422
    %v1447 = vpack.c.b16 %v1423, %v1423
    %v1448 = vpack.c.b16 %v1424, %v1424
    %v1449 = vpack.c.b16 %v1425, %v1425
    %v1450 = vpack.c.b16 %v1426, %v1426
    %v1451 = vpack.c.b16 %v1427, %v1427
    %v1452 = vpack.c.b16 %v1428, %v1428
    %v1453 = vpack.c.b16 %v1429, %v1429
    %v1454 = vpack.c.b16 %v1430, %v1430
    %v1455 = vpack.c.b16 %v1431, %v1431
    %v1456 = vpack.c.b16 %v1432, %v1432
    %v1457 = vpack.c.b16 %v1433, %v1433
    %v1458 = vpack.c.b16 %v1434, %v1434
    %v1459 = vpack.c.b16 %v1435, %v1435
    %v1460 = vpack.c.b16 %v1436, %v1436
    %v1461 = vpack.c.b16 %v1437, %v1437
    %v1462 = vpack.c.b16 %v1438, %v1438
    %v1463 = vpack.c.b16 %v1439, %v1439
    %v1464 = vpack.c.b16 %v1440, %v1440
    %1489 = vst [vmem:[#allocation5] sm:$0xf] %v1441
    %1490 = vst [vmem:[#allocation5 + $0x4] sm:$0xf] %v1442
    %1491 = vst [vmem:[#allocation5 + $0x8] sm:$0xf] %v1443
    %1492 = vst [vmem:[#allocation5 + $0xc] sm:$0xf] %v1444
    %1493 = vst [vmem:[#allocation5 + $0x10] sm:$0xf] %v1445
    %1494 = vst [vmem:[#allocation5 + $0x14] sm:$0xf] %v1446
    %1495 = vst [vmem:[#allocation5 + $0x18] sm:$0xf] %v1447
    %1496 = vst [vmem:[#allocation5 + $0x1c] sm:$0xf] %v1448
    %1497 = vst [vmem:[#allocation5 + $0x20] sm:$0xf] %v1449
    %1498 = vst [vmem:[#allocation5 + $0x24] sm:$0xf] %v1450
    %1499 = vst [vmem:[#allocation5 + $0x28] sm:$0xf] %v1451
    %1500 = vst [vmem:[#allocation5 + $0x2c] sm:$0xf] %v1452
    %1501 = vst [vmem:[#allocation5 + $0x30] sm:$0xf] %v1453
    %1502 = vst [vmem:[#allocation5 + $0x34] sm:$0xf] %v1454
    %1503 = vst [vmem:[#allocation5 + $0x38] sm:$0xf] %v1455
    %1504 = vst [vmem:[#allocation5 + $0x3c] sm:$0xf] %v1456
    %1505 = vst [vmem:[#allocation5 + $0x40] sm:$0xf] %v1457
    %1506 = vst [vmem:[#allocation5 + $0x44] sm:$0xf] %v1458
    %1507 = vst [vmem:[#allocation5 + $0x48] sm:$0xf] %v1459
    %1508 = vst [vmem:[#allocation5 + $0x4c] sm:$0xf] %v1460
    %1509 = vst [vmem:[#allocation5 + $0x50] sm:$0xf] %v1461
    %1510 = vst [vmem:[#allocation5 + $0x54] sm:$0xf] %v1462
    %1511 = vst [vmem:[#allocation5 + $0x58] sm:$0xf] %v1463
    %1512 = vst [vmem:[#allocation5 + $0x5c] sm:$0xf] %v1464
    // Predicated region
    $region42: #{tpu_custom_call.1} parent=1 // pred_check
      _
    $region43: #{tpu_custom_call.1} parent=1 // pred_check_branch
      %1514 = sbr.rel (0) target = $region45
    $region44: #{tpu_custom_call.1} parent=1 // pred_region
      %s1516 = ssub.s32 1536, 1536
      %1517 = vsyncadd [#allocation4], %s1516
      %s1518 = sshll.u32 [#allocation5], 4
      %s1519 = int_to_ptr.vmem [resolvable:$true] %s1518
      %1524 = dma.vmem_to_hbm [thread:$0]  %s1519, 1536, %s9, [#allocation4], 64, 64, 4
    $region45: #{tpu_custom_call.1} parent=1 // pred_fallthru
      _
    // Predicated region
    $region46: #{tpu_custom_call.1} parent=1 // pred_check
      _
    $region47: #{tpu_custom_call.1} parent=1 // pred_check_branch
      %1526 = sbr.rel (0) target = $region49
    $region48: #{tpu_custom_call.1} parent=1 // pred_region
      %1527 = dma.done [#allocation4], 1536
    $region49: #{tpu_custom_call.1} parent=1 // pred_fallthru
      _
    %1528 = vsyncpa [#allocation3], 1
    %1529 = vsyncpa [#allocation4], 1

</llo_original>
